<compile_context>
chip_gen: v7x
topology: tpu7x:2x2x1
jax: 0.10.0
libtpu: 0.0.40
codegen_flags: <defaults>
</compile_context>

<pallas_src>
import jax
import jax.numpy as jnp
import numpy as np
from jax.experimental import pallas as pl
from jax.experimental.pallas import tpu as pltpu

K_IN = 5          # true input features
K_PAD = 8         # zero-padded contraction dim (full sublane group)
HIDDEN = 32
LANE_TILE = 512   # batch tile on the lane axis (sweet spot for HBM roofline)


def _mlp_kernel(xT_ref, w1T_ref, bw_ref, b2_ref, o_ref):
    # xT_ref : (K_PAD, TB)    -- batch on lanes (lane-dense)
    # w1T_ref: (HIDDEN, K_PAD)
    # bw_ref : (HIDDEN, 2)    -- column 0 = b1, column 1 = w2
    # b2_ref : (1, 1) scalar in SMEM
    # o_ref  : (1, TB)
    h = jnp.dot(w1T_ref[...], xT_ref[...],
                preferred_element_type=jnp.float32)          # (HIDDEN, TB) on MXU
    bw = bw_ref[...]                                         # (HIDDEN, 2)
    h = jnp.maximum(h + bw[:, 0:1], 0.0)                     # bias lane-broadcast + ReLU (VPU)
    # fc2 as multiply + cross-sublane reduce (XLU) instead of an N=1 MXU matmul
    y = jnp.sum(h * bw[:, 1:2], axis=0, keepdims=True)       # (1, TB)
    o_ref[...] = (y + b2_ref[0, 0]).astype(o_ref.dtype)


def regression_forward(x, w1, b1, w2, b2, *, lane_tile=LANE_TILE):
    """y = relu(x @ w1 + b1) @ w2 + b2, computed in a transposed lane-dense layout."""
    B, K = x.shape
    H = w1.shape[1]

    # Adaptive lane tile: large DMAs amortise per-grid-step overhead, but don't
    # pad a tiny batch all the way out to 512 lanes.
    b128 = ((B + 127) // 128) * 128
    tb = min(lane_tile, b128)
    b_pad = ((B + tb - 1) // tb) * tb

    # Single fused pad of the transposed input (K 5->8, batch B->b_pad).
    xT = jnp.pad(jnp.asarray(x, jnp.float32).T,
                 ((0, K_PAD - K), (0, b_pad - B)))
    w1T = jnp.pad(jnp.asarray(w1, jnp.float32).T, ((0, 0), (0, K_PAD - K)))
    bw = jnp.stack([jnp.asarray(b1, jnp.float32).reshape(H),
                    jnp.asarray(w2, jnp.float32).reshape(H)], axis=1)  # (H, 2)
    b2c = jnp.asarray(b2, jnp.float32).reshape(1, 1)

    grid = (b_pad // tb,)

    cost = pl.CostEstimate(
        flops=2 * b_pad * K_PAD * H + 3 * b_pad * H,
        transcendentals=0,
        bytes_accessed=4 * (K_PAD * b_pad + b_pad + H * K_PAD + 2 * H + 1),
    )

    yT = pl.pallas_call(
        _mlp_kernel,
        out_shape=jax.ShapeDtypeStruct((1, b_pad), jnp.float32),
        grid=grid,
        in_specs=[
            pl.BlockSpec((K_PAD, tb), lambda i: (0, i)),        # x tile, pipelined over batch
            pl.BlockSpec((H, K_PAD), lambda i: (0, 0)),         # W1^T resident in VMEM
            pl.BlockSpec((H, 2), lambda i: (0, 0)),             # packed [b1 | w2] resident
            pl.BlockSpec(memory_space=pltpu.MemorySpace.SMEM),  # b2 scalar in SMEM
        ],
        out_specs=pl.BlockSpec((1, tb), lambda i: (0, i)),
        compiler_params=pltpu.CompilerParams(
            dimension_semantics=("parallel",),                  # shard batch tiles across TCs (v7x)
        ),
        cost_estimate=cost,
    )(xT, w1T, bw, b2c)

    return yT[:, :B].T                                          # (B, 1)


def init_params(key):
    """Deterministic init mirroring nn.Linear default (uniform +-1/sqrt(fan_in))."""
    k1, k2, k3, k4 = jax.random.split(key, 4)
    bound1 = 1.0 / np.sqrt(5.0)
    bound2 = 1.0 / np.sqrt(32.0)
    w1 = jax.random.uniform(k1, (K_IN, HIDDEN), jnp.float32, -bound1, bound1)
    b1 = jax.random.uniform(k2, (HIDDEN,), jnp.float32, -bound1, bound1)
    w2 = jax.random.uniform(k3, (HIDDEN, 1), jnp.float32, -bound2, bound2)
    b2 = jax.random.uniform(k4, (1,), jnp.float32, -bound2, bound2)
    return w1, b1, w2, b2


def reference_forward(x, w1, b1, w2, b2):
    h = jnp.maximum(x @ w1 + b1, 0.0)
    return h @ w2 + b2


if __name__ == "__main__":
    key = jax.random.PRNGKey(0)
    kx, kx2, kx3, kp = jax.random.split(key, 4)
    w1, b1, w2, b2 = init_params(kp)

    # Small batch (single grid step, tile clamped to 128 lanes)
    B = 8
    x = jax.random.normal(kx, (B, K_IN), jnp.float32)
    out = jax.block_until_ready(regression_forward(x, w1, b1, w2, b2))
    ref = reference_forward(x, w1, b1, w2, b2)
    np.testing.assert_allclose(np.asarray(out), np.asarray(ref), rtol=1e-5, atol=1e-5)
    assert out.shape == (B, 1)

    # Batch that is not a multiple of 128 (padded tail masked off by the slice)
    B2 = 200
    x2 = jax.random.normal(kx2, (B2, K_IN), jnp.float32)
    out2 = jax.block_until_ready(regression_forward(x2, w1, b1, w2, b2))
    ref2 = reference_forward(x2, w1, b1, w2, b2)
    np.testing.assert_allclose(np.asarray(out2), np.asarray(ref2), rtol=1e-5, atol=1e-5)
    assert out2.shape == (B2, 1)

    # Batch large enough to exercise multiple 512-lane grid steps
    B3 = 1030
    x3 = jax.random.normal(kx3, (B3, K_IN), jnp.float32)
    out3 = jax.block_until_ready(regression_forward(x3, w1, b1, w2, b2))
    ref3 = reference_forward(x3, w1, b1, w2, b2)
    np.testing.assert_allclose(np.asarray(out3), np.asarray(ref3), rtol=1e-5, atol=1e-5)
    assert out3.shape == (B3, 1)

    print("KERNEL_OK")
</pallas_src>

<mosaic_0001>
module attributes {stable_mosaic.version = 11 : i64} {
  func.func @_mlp_kernel(%arg0: i32, %arg1: memref<8x128xf32, #tpu.memory_space<vmem>>, %arg2: memref<32x8xf32, #tpu.memory_space<vmem>>, %arg3: memref<32x2xf32, #tpu.memory_space<vmem>>, %arg4: memref<1x1xf32, #tpu.memory_space<smem>>, %arg5: memref<1x128xf32, #tpu.memory_space<vmem>>) attributes {dimension_semantics = [#tpu.dimension_semantics<parallel>], iteration_bounds = array<i64: 1>, scalar_prefetch = 0 : i64, scratch_operands = 0 : i64, tpu.core_type = #tpu.core_type<tc>, window_params = [{transform_indices = @transform_0, window_bounds = array<i64: 8, 128>}, {pipeline_mode = #tpu.pipeline_mode<synchronous>, transform_indices = @transform_1, window_bounds = array<i64: 32, 8>}, {pipeline_mode = #tpu.pipeline_mode<synchronous>, transform_indices = @transform_2, window_bounds = array<i64: 32, 2>}, {transform_indices = @transform_3, window_bounds = array<i64: 1, 1>}, {transform_indices = @transform_4, window_bounds = array<i64: 1, 128>}]} {
    %c0 = arith.constant 0 : index
    %c0_0 = arith.constant 0 : index
    %0 = vector.load %arg2[%c0, %c0_0] : memref<32x8xf32, #tpu.memory_space<vmem>>, vector<32x8xf32>
    %c0_1 = arith.constant 0 : index
    %c0_2 = arith.constant 0 : index
    %1 = vector.load %arg1[%c0_1, %c0_2] : memref<8x128xf32, #tpu.memory_space<vmem>>, vector<8x128xf32>
    %cst = arith.constant dense<0.000000e+00> : vector<32x128xf32>
    %2 = tpu.matmul %0, %1, %cst {dimension_numbers = #tpu.dot_dimension_numbers<[1], [0], [0], [1], [0, 0, 1, 1], [], []>} : vector<32x8xf32>, vector<8x128xf32>, vector<32x128xf32> -> vector<32x128xf32>
    %c0_3 = arith.constant 0 : index
    %c0_4 = arith.constant 0 : index
    %3 = vector.load %arg3[%c0_3, %c0_4] : memref<32x2xf32, #tpu.memory_space<vmem>>, vector<32x2xf32>
    %4 = vector.extract_strided_slice %3 {offsets = [0, 0], sizes = [32, 1], strides = [1, 1]} : vector<32x2xf32> to vector<32x1xf32>
    %5 = vector.broadcast %4 : vector<32x1xf32> to vector<32x128xf32>
    %6 = arith.addf %2, %5 : vector<32x128xf32>
    %cst_5 = arith.constant 0.000000e+00 : f32
    %7 = vector.broadcast %cst_5 : f32 to vector<32x128xf32>
    %8 = arith.maximumf %6, %7 : vector<32x128xf32>
    %9 = vector.extract_strided_slice %3 {offsets = [0, 1], sizes = [32, 1], strides = [1, 1]} : vector<32x2xf32> to vector<32x1xf32>
    %10 = vector.broadcast %9 : vector<32x1xf32> to vector<32x128xf32>
    %11 = arith.mulf %8, %10 : vector<32x128xf32>
    %cst_6 = arith.constant dense<0.000000e+00> : vector<128xf32>
    %12 = vector.multi_reduction <add>, %11, %cst_6 [0] : vector<32x128xf32> to vector<128xf32>
    %13 = vector.shape_cast %12 : vector<128xf32> to vector<1x128xf32>
    %c0_7 = arith.constant 0 : index
    %c0_8 = arith.constant 0 : index
    %14 = memref.load %arg4[%c0_7, %c0_8] : memref<1x1xf32, #tpu.memory_space<smem>>
    %15 = vector.broadcast %14 : f32 to vector<1x128xf32>
    %16 = arith.addf %13, %15 : vector<1x128xf32>
    %c0_9 = arith.constant 0 : index
    %c0_10 = arith.constant 0 : index
    %17 = vector.load %arg5[%c0_9, %c0_10] : memref<1x128xf32, #tpu.memory_space<vmem>>, vector<1x128xf32>
    tpu.vector_store %arg5[%c0_9, %c0_10], %16 {strides = array<i32>} : memref<1x128xf32, #tpu.memory_space<vmem>>, vector<1x128xf32>,
    return
  }
  func.func @transform_0(%arg0: i32) -> (i32, i32) {
    %c0_i32 = arith.constant 0 : i32
    %c0_i32_0 = arith.constant 0 : i32
    return %c0_i32, %arg0 : i32, i32
  }
  func.func @transform_1(%arg0: i32) -> (i32, i32) {
    %c0_i32 = arith.constant 0 : i32
    %c0_i32_0 = arith.constant 0 : i32
    %c0_i32_1 = arith.constant 0 : i32
    return %c0_i32, %c0_i32_0 : i32, i32
  }
  func.func @transform_2(%arg0: i32) -> (i32, i32) {
    %c0_i32 = arith.constant 0 : i32
    %c0_i32_0 = arith.constant 0 : i32
    %c0_i32_1 = arith.constant 0 : i32
    return %c0_i32, %c0_i32_0 : i32, i32
  }
  func.func @transform_3(%arg0: i32) -> (i32, i32) {
    %c0_i32 = arith.constant 0 : i32
    %c0_i32_0 = arith.constant 0 : i32
    %c0_i32_1 = arith.constant 0 : i32
    return %c0_i32, %c0_i32_0 : i32, i32
  }
  func.func @transform_4(%arg0: i32) -> (i32, i32) {
    %c0_i32 = arith.constant 0 : i32
    %c0_i32_0 = arith.constant 0 : i32
    return %c0_i32, %arg0 : i32, i32
  }
}

</mosaic_0001>

<llo_original>
// kernel: tpu_custom_call.1
$region0: #{tpu_custom_call.1}
  #allocation0 [shape = 'u32[]', space=smem, size = 0x4, offset = 0x4, fixed_abs, tag = 'smem constant byte address 0x4 - core index']
  #allocation1 [shape = 'u32[144,128]{1,0:T(1,128)}', space=vmem, size = 0x12000, scoped, tag = 'internal scratch']
  #allocation2 [shape = 'f32[1,1]{1,0:T(1,128)S(6)}', space=smem, size = 0x200, scoped, tag = 'scoped memory for tpu_custom_call.1']
  %s0 = inlined_call_operand.vmem [shape: f32[8,128], index: 0, kind: input, shape index: {}]
  %s1 = inlined_call_operand.vmem [shape: f32[32,8], index: 1, kind: input, shape index: {}]
  %s2 = inlined_call_operand.vmem [shape: f32[32,2], index: 2, kind: input, shape index: {}]
  %s3 = inlined_call_operand.<no memory space> [shape: f32[1,1], index: 3, kind: input, shape index: {}]
  %s4 = inlined_call_operand.hbm [shape: f32[1,128], index: 4, kind: output, shape index: {}]
  %s5 = sld [smem:[#allocation0]]
  $region26: #{tpu_custom_call.1} parent=0
    _
  %s7 = ssub.s32 1, %s5
  %s8 = scalar_select 0, %s7, %s5
  %9 = sst [smem:[#allocation2]] %s3
  $region1: #{tpu_custom_call.1} parent=0
    #allocation3 [shape = 'u8[512]{0}', space=vmem, size = 0x400, scoped, tag = 'output window, operand 0, single buffered']
    #allocation4 [shape = 's32[1]{0}', space=sflag, size = 0x4, scoped, tag = 'scoped memory for tpu_custom_call.1']
    %10 = vsyncpa [#allocation4], 0
    // Predicated region
    $region2: #{tpu_custom_call.1} parent=1 // pred_check
      _
    $region3: #{tpu_custom_call.1} parent=1 // pred_check_branch
      %12 = sbr.rel (0) target = $region5
    $region4: #{tpu_custom_call.1} parent=1 // pred_region
      _
    $region5: #{tpu_custom_call.1} parent=1 // pred_fallthru
      _
    // Predicated region
    $region6: #{tpu_custom_call.1} parent=1 // pred_check
      _
    $region7: #{tpu_custom_call.1} parent=1 // pred_check_branch
      %14 = sbr.rel (0) target = $region9
    $region8: #{tpu_custom_call.1} parent=1 // pred_region
      _
    $region9: #{tpu_custom_call.1} parent=1 // pred_fallthru
      _
    // Predicated region
    $region10: #{tpu_custom_call.1} parent=1 // pred_check
      _
    $region11: #{tpu_custom_call.1} parent=1 // pred_check_branch
      %16 = sbr.rel (0) target = $region13
    $region12: #{tpu_custom_call.1} parent=1 // pred_region
      _
    $region13: #{tpu_custom_call.1} parent=1 // pred_fallthru
      _
    // Predicated region
    $region14: #{tpu_custom_call.1} parent=1 // pred_check
      _
    $region15: #{tpu_custom_call.1} parent=1 // pred_check_branch
      %18 = sbr.rel (0) target = $region17
    $region16: #{tpu_custom_call.1} parent=1 // pred_region
      _
    $region17: #{tpu_custom_call.1} parent=1 // pred_fallthru
      _
    %v19 = vld [vmem:[%s1] sm:$0xff]
    %v20 = vld [vmem:[%s1 + $0x8] sm:$0xff]
    %v21 = vld [vmem:[%s1 + $0x10] sm:$0xff]
    %v22 = vld [vmem:[%s1 + $0x18] sm:$0xff]
    %v23 = vld [vmem:[%s0] sm:$0xff]
    %v24 = vld [vmem:[%s2] sm:$0xff]
    %v25 = vld [vmem:[%s2 + $0x8] sm:$0xff]
    %v26 = vld [vmem:[%s2 + $0x10] sm:$0xff]
    %v27 = vld [vmem:[%s2 + $0x18] sm:$0xff]
    %29 = vset.pattern.permute.xlu0 0
    %30 = vperm.xlu0 %29, %v24
    %v31 = vpop.permute.xlu0 %30
    %34 = vset.pattern.permute.xlu0 0
    %35 = vperm.xlu0 %34, %v25
    %v36 = vpop.permute.xlu0 %35
    %39 = vset.pattern.permute.xlu0 0
    %40 = vperm.xlu0 %39, %v26
    %v41 = vpop.permute.xlu0 %40
    %44 = vset.pattern.permute.xlu0 0
    %45 = vperm.xlu0 %44, %v27
    %v46 = vpop.permute.xlu0 %45
    %vm48 = vcmask 64512
    %v50 = vsel %vm48, %v19, 0
    %v53 = vsel %vm48, %v20, 0
    %v56 = vsel %vm48, %v21, 0
    %v59 = vsel %vm48, %v22, 0
    %61 = vmatprep.subr.mxu0 0.0
    %62 = vmatpush1.msra.mxu0 %v23
    %63 = vmatprep.subr.mxu0 0.0
    %64 = vmatpush1.msra.mxu0 0.0
    %65 = vmatprep.subr.mxu0 0.0
    %66 = vmatpush1.msra.mxu0 0.0
    %67 = vmatprep.subr.mxu0 0.0
    %68 = vmatpush1.msra.mxu0 0.0
    %69 = vmatprep.subr.mxu0 0.0
    %70 = vmatpush1.msra.mxu0 0.0
    %71 = vmatprep.subr.mxu0 0.0
    %72 = vmatpush1.msra.mxu0 0.0
    %73 = vmatprep.subr.mxu0 0.0
    %74 = vmatpush1.msra.mxu0 0.0
    %75 = vmatprep.subr.mxu0 0.0
    %76 = vmatpush1.msra.mxu0 0.0
    %77 = vmatprep.subr.mxu0 0.0
    %78 = vmatpush1.msra.mxu0 0.0
    %79 = vmatprep.subr.mxu0 0.0
    %80 = vmatpush1.msra.mxu0 0.0
    %81 = vmatprep.subr.mxu0 0.0
    %82 = vmatpush1.msra.mxu0 0.0
    %83 = vmatprep.subr.mxu0 0.0
    %84 = vmatpush1.msra.mxu0 0.0
    %85 = vmatprep.subr.mxu0 0.0
    %86 = vmatpush1.msra.mxu0 0.0
    %87 = vmatprep.subr.mxu0 0.0
    %88 = vmatpush1.msra.mxu0 0.0
    %89 = vmatprep.subr.mxu0 0.0
    %90 = vmatpush1.msra.mxu0 0.0
    %91 = vmatprep.subr.mxu0 0.0
    %92 = vmatpush1.msra.mxu0 0.0
    %93 = vmatprep.subr.mxu0 0.0
    %94 = vmatpush1.msra.mxu0 0.0
    %95 = vmatprep.subr.mxu0 0.0
    %96 = vmatpush1.msra.mxu0 0.0
    %97 = vmatprep.subr.mxu0 0.0
    %98 = vmatpush1.msra.mxu0 0.0
    %99 = vmatprep.subr.mxu0 0.0
    %100 = vmatpush1.msra.mxu0 0.0
    %101 = vmatprep.subr.mxu0 0.0
    %102 = vmatpush1.msra.mxu0 0.0
    %103 = vmatprep.subr.mxu0 0.0
    %104 = vmatpush1.msra.mxu0 0.0
    %105 = vmatprep.subr.mxu0 0.0
    %106 = vmatpush1.msra.mxu0 0.0
    %107 = vmatprep.subr.mxu0 0.0
    %108 = vmatpush1.msra.mxu0 0.0
    %109 = vmatprep.subr.mxu0 0.0
    %110 = vmatpush1.msra.mxu0 0.0
    %111 = vmatprep.subr.mxu0 0.0
    %112 = vmatpush1.msra.mxu0 0.0
    %113 = vmatprep.subr.mxu0 0.0
    %114 = vmatpush1.msra.mxu0 0.0
    %115 = vmatprep.subr.mxu0 0.0
    %116 = vmatpush1.msra.mxu0 0.0
    %117 = vmatprep.subr.mxu0 0.0
    %118 = vmatpush1.msra.mxu0 0.0
    %119 = vmatprep.subr.mxu0 0.0
    %120 = vmatpush1.msra.mxu0 0.0
    %121 = vmatprep.subr.mxu0 0.0
    %122 = vmatpush1.msra.mxu0 0.0
    %123 = vmatprep.subr.mxu0 0.0
    %124 = vmatpush1.msra.mxu0 0.0
    %125 = vmatprep.mubr.f32.mxu0 0.0
    %126 = vmatmul.mubr.f32.gmra.mrb[0].mxu0 %v50
    %v127 = vpop.f32.mrb[0].mxu0
    %v128 = vadd.f32 %v31, %v127
    %v129 = vpop.f32.mrb[0].mxu0
    %130 = vmatprep.mubr.f32.mxu0 0.0
    %131 = vmatmul.mubr.f32.gmra.mrb[0].mxu0 %v53
    %v132 = vpop.f32.mrb[0].mxu0
    %v133 = vadd.f32 %v36, %v132
    %v134 = vpop.f32.mrb[0].mxu0
    %135 = vmatprep.mubr.f32.mxu0 0.0
    %136 = vmatmul.mubr.f32.gmra.mrb[0].mxu0 %v56
    %v137 = vpop.f32.mrb[0].mxu0
    %v138 = vadd.f32 %v41, %v137
    %v139 = vpop.f32.mrb[0].mxu0
    %140 = vmatprep.mubr.f32.mxu0 0.0
    %141 = vmatmul.mubr.f32.gmra.mrb[0].mxu0 %v59
    %v142 = vpop.f32.mrb[0].mxu0
    %v143 = vadd.f32 %v46, %v142
    %v144 = vpop.f32.mrb[0].mxu0
    %145 = vdwg.mxu0
    %v146 = vmax.f32 %v128, 0.0
    %v147 = vmax.f32 %v133, 0.0
    %v148 = vmax.f32 %v138, 0.0
    %v149 = vmax.f32 %v143, 0.0
    %150 = vset.pattern.permute.xlu0 1
    %151 = vperm.xlu0 %150, %v24
    %v152 = vpop.permute.xlu0 %151
    %154 = vset.pattern.permute.xlu0 1
    %155 = vperm.xlu0 %154, %v25
    %v156 = vpop.permute.xlu0 %155
    %158 = vset.pattern.permute.xlu0 1
    %159 = vperm.xlu0 %158, %v26
    %v160 = vpop.permute.xlu0 %159
    %162 = vset.pattern.permute.xlu0 1
    %163 = vperm.xlu0 %162, %v27
    %v164 = vpop.permute.xlu0 %163
    %v166 = vmul.f32 %v146, %v152
    %v167 = vmul.f32 %v147, %v156
    %v168 = vmul.f32 %v148, %v160
    %v169 = vmul.f32 %v149, %v164
    %v170 = vadd.f32 %v166, %v167
    %v171 = vadd.f32 %v170, %v168
    %v172 = vadd.f32 %v171, %v169
    %v173 = vrot.slane %v172, 4
    %v174 = vadd.f32 %v172, %v173
    %v175 = vrot.slane %v174, 2
    %v176 = vadd.f32 %v174, %v175
    %v177 = vrot.slane %v176, 1
    %v178 = vadd.f32 %v176, %v177
    %s179 = sld [smem:[#allocation2]]
    %v180 = vstv %s179
    %v181 = vadd.f32 %v178, %v180
    %182 = vst [vmem:[#allocation3] sm:$0x1] %v181
    // Predicated region
    $region18: #{tpu_custom_call.1} parent=1 // pred_check
      _
    $region19: #{tpu_custom_call.1} parent=1 // pred_check_branch
      %184 = sbr.rel (0) target = $region21
    $region20: #{tpu_custom_call.1} parent=1 // pred_region
      %s186 = ssub.s32 16, 16
      %187 = vsyncadd [#allocation4], %s186
      %s189 = sshll.u32 [#allocation3], 4
      %s190 = int_to_ptr.vmem [resolvable:$true] %s189
      %192 = dma.vmem_to_hbm [thread:$0]  %s190, 16, %s4, [#allocation4]
    $region21: #{tpu_custom_call.1} parent=1 // pred_fallthru
      _
    // Predicated region
    $region22: #{tpu_custom_call.1} parent=1 // pred_check
      _
    $region23: #{tpu_custom_call.1} parent=1 // pred_check_branch
      %194 = sbr.rel (0) target = $region25
    $region24: #{tpu_custom_call.1} parent=1 // pred_region
      %195 = dma.done [#allocation4], 16
    $region25: #{tpu_custom_call.1} parent=1 // pred_fallthru
      _
    %196 = vsyncpa [#allocation4], 1

</llo_original>
